<compile_context>
chip_gen: v7x
topology: tpu7x:2x2x1
jax: 0.10.0
libtpu: 0.0.40
codegen_flags: <defaults>
</compile_context>

<pallas_src>
import functools

import numpy as np
import jax
import jax.numpy as jnp
from jax import lax
from jax.experimental import pallas as pl
from jax.experimental.pallas import tpu as pltpu

_EPS = 1e-12
_ROW_BUCKET = 16   # bf16: one vreg holds [16, 128]
_LANE = 128

_VSPEC = pl.BlockSpec(memory_space=pltpu.MemorySpace.VMEM)


def _round_up(n, m):
    return ((n + m - 1) // m) * m


def _pad_rows(x, multiple=_ROW_BUCKET):
    n = x.shape[0]
    n_pad = _round_up(n, multiple)
    if n_pad == n:
        return x, n
    return jnp.pad(x, ((0, n_pad - n), (0, 0))), n


# --------------------------------------------------------------------------------------
# Kernels
# --------------------------------------------------------------------------------------
def _probs_idx_kernel(z_ref, zcT_ref, probs_ref, idx_ref, *, c_real):
    """probs + argmax for a single classifier (matches PyTorch classify() semantics).

    logits = (z @ zcT) * rsqrt(sum(z*z) + eps); padded class columns masked to -inf.
    """
    z_bf = z_ref[...]                                            # [N, D] bf16
    zcT = zcT_ref[...]                                           # [D, Cp] bf16
    z_f32 = z_bf.astype(jnp.float32)
    sumsq = jnp.sum(z_f32 * z_f32, axis=-1, keepdims=True)       # [N, 1] f32
    inv_norm = lax.rsqrt(sumsq + _EPS)                           # safe for zero pad rows
    raw = lax.dot_general(                                       # [N, Cp] f32, RHS already [K, N]
        z_bf, zcT,
        dimension_numbers=(((1,), (0,)), ((), ())),
        preferred_element_type=jnp.float32,
    )
    logits = raw * inv_norm
    c_pad = logits.shape[-1]
    if c_real < c_pad:                                           # static: mask padded prototypes
        lane = lax.broadcasted_iota(jnp.int32, logits.shape, 1)
        logits = jnp.where(lane < c_real, logits, -jnp.inf)
    # softmax(dim=-1) in f32
    m = jnp.max(logits, axis=-1, keepdims=True)
    e = jnp.exp(logits - m)                                      # padded cols -> exactly 0
    s = jnp.sum(e, axis=-1, keepdims=True)
    probs_ref[...] = e * pl.reciprocal(s, approx=True)
    # argmax on logits (softmax is row-monotone); lane-dense int32 store
    idx = jnp.argmax(logits, axis=-1, keepdims=True).astype(jnp.int32)
    idx_ref[...] = jnp.broadcast_to(idx, idx_ref.shape)


def _batched_idx_kernel(off_ref, cnt_ref, z_ref, zcT_ref, idx_ref):
    """Argmax-only, batched over classifiers.

    No normalization: argmax(raw) == argmax(raw * rsqrt(sumsq+eps)) since the scale is > 0.
    Each row's argmax is restricted to lanes [off, off+cnt) of the concatenated prototype slab.
    """
    z_bf = z_ref[...]                                            # [N, D]  bf16
    zcT = zcT_ref[...]                                           # [D, Ct] bf16
    raw = lax.dot_general(
        z_bf, zcT,
        dimension_numbers=(((1,), (0,)), ((), ())),
        preferred_element_type=jnp.float32,
    )                                                            # [N, Ct] f32
    off = off_ref[...]                                           # [N, 1] int32
    cnt = cnt_ref[...]                                           # [N, 1] int32
    lane = lax.broadcasted_iota(jnp.int32, raw.shape, 1)
    in_range = (lane >= off) & (lane < off + cnt)
    masked = jnp.where(in_range, raw, -jnp.inf)
    gidx = jnp.argmax(masked, axis=-1, keepdims=True).astype(jnp.int32)
    idx_ref[...] = jnp.broadcast_to(gidx - off, idx_ref.shape)   # classifier-local index


# --------------------------------------------------------------------------------------
# Host wrappers
# --------------------------------------------------------------------------------------
def prepare_classifier(Z_cls, txt_cls):
    """Pre-pack a classifier once: bf16, class axis padded to a multiple of 128, transposed to [D, C_pad]."""
    C, _ = Z_cls.shape
    c_pad = _round_up(C, _LANE)
    zc = jnp.pad(jnp.asarray(Z_cls), ((0, c_pad - C), (0, 0))).astype(jnp.bfloat16)   # [C_pad, D]
    return {"zcT": jnp.asarray(zc.T), "C": C, "labels": list(txt_cls)}                # [D, C_pad]


def fewshot_classify(Z, clf):
    """Normalize, score against one classifier, softmax + argmax.  Returns (probs [N,C] f32, idx [N] i32)."""
    N = Z.shape[0]
    C = clf["C"]
    zcT = clf["zcT"]
    c_pad = zcT.shape[1]
    z_bf, _ = _pad_rows(Z.astype(jnp.bfloat16))
    n_pad = z_bf.shape[0]
    probs, idx = pl.pallas_call(
        functools.partial(_probs_idx_kernel, c_real=C),
        out_shape=(
            jax.ShapeDtypeStruct((n_pad, c_pad), jnp.float32),
            jax.ShapeDtypeStruct((n_pad, 128), jnp.int32),
        ),
        in_specs=[_VSPEC, _VSPEC],
        out_specs=(_VSPEC, _VSPEC),
    )(z_bf, zcT)
    return probs[:N, :C], idx[:N, 0]


def _batched_argmax(z_bf, zcT_all, off, cnt):
    n_pad = z_bf.shape[0]
    return pl.pallas_call(
        _batched_idx_kernel,
        out_shape=jax.ShapeDtypeStruct((n_pad, 128), jnp.int32),
        in_specs=[_VSPEC, _VSPEC, _VSPEC, _VSPEC],
        out_specs=_VSPEC,
    )(off, cnt, z_bf, zcT_all)


def fewshot_classify_idx(Z, clf):
    """Argmax-only single-classifier variant (no norm, no softmax). Returns idx [N] int32."""
    N = Z.shape[0]
    z_bf, _ = _pad_rows(Z.astype(jnp.bfloat16))
    n_pad = z_bf.shape[0]
    off = jnp.zeros((n_pad, 1), jnp.int32)
    cnt = jnp.full((n_pad, 1), clf["C"], jnp.int32)
    idx = _batched_argmax(z_bf, clf["zcT"], off, cnt)
    return idx[:N, 0]


def fewshot_forward(Z_boxes, labels, classifiers):
    """Host glue reproducing FewShot.forward: ONE batched kernel launch for all valid boxes.

    Z_boxes: [N, D] box embeddings (stand-in for encode_boxes output)
    labels:  list[str] length N
    classifiers: {label: prepare_classifier(...)}
    """
    valid = np.asarray([l in classifiers for l in labels])
    all_clses = np.array([None] * len(labels), dtype=object)
    if not valid.any():
        return all_clses
    labels_np = np.asarray(labels)
    rows = np.nonzero(valid)[0]

    # Concatenate pre-packed [D, C_pad] slabs for the classifiers actually used; record offsets.
    uniq = list(dict.fromkeys(labels_np[rows]))
    slabs, meta, cur = [], {}, 0
    for lbl in uniq:
        d = classifiers[str(lbl)]
        slabs.append(d["zcT"])
        meta[str(lbl)] = (cur, d["C"])
        cur += d["zcT"].shape[1]
    zcT_all = slabs[0] if len(slabs) == 1 else jnp.concatenate(slabs, axis=1)

    # One gather / cast / pad for all valid boxes; per-row class window as int32.
    Zv = jnp.asarray(Z_boxes)[rows]
    z_bf, n_valid = _pad_rows(Zv.astype(jnp.bfloat16))
    n_pad = z_bf.shape[0]
    off_np = np.zeros((n_pad, 1), np.int32)
    cnt_np = np.zeros((n_pad, 1), np.int32)
    for pos, r in enumerate(rows):
        o, c = meta[str(labels_np[r])]
        off_np[pos, 0] = o
        cnt_np[pos, 0] = c

    idx = _batched_argmax(z_bf, zcT_all, jnp.asarray(off_np), jnp.asarray(cnt_np))
    idx_np = np.asarray(idx)[:n_valid, 0]   # single device->host sync

    for pos, r in enumerate(rows):
        d = classifiers[str(labels_np[r])]
        all_clses[r] = d["labels"][int(idx_np[pos])]
    return all_clses


# --------------------------------------------------------------------------------------
# Demo / self-test
# --------------------------------------------------------------------------------------
if __name__ == "__main__":
    key = jax.random.PRNGKey(0)
    kz, k1, k2 = jax.random.split(key, 3)

    N, D = 8, 512                 # boxes, CLIP ViT-B/32 embedding dim
    C_person, C_car = 100, 60     # both < 128 -> exercises class padding + -inf masking

    Z_boxes = jax.random.normal(kz, (N, D), dtype=jnp.float32)

    def make_protos(k, c):
        z = jax.random.normal(k, (c, D), dtype=jnp.float32)
        return z / jnp.linalg.norm(z, axis=1, keepdims=True)

    Zc_person = make_protos(k1, C_person)
    Zc_car = make_protos(k2, C_car)
    txt_person = [f"person_{i}" for i in range(C_person)]
    txt_car = [f"car_{i}" for i in range(C_car)]

    classifiers = {
        "person": prepare_classifier(Zc_person, txt_person),
        "car": prepare_classifier(Zc_car, txt_car),
    }
    labels = ["person", "car", "dog", "person", "car", "cat", "person", "person"]  # rows 2,5 invalid

    # Pure-JAX reference mirroring the kernel math (bf16 products, f32 accumulation, fused rsqrt norm).
    def ref_logits(Z, Zc):
        zb = Z.astype(jnp.bfloat16)
        zcb = Zc.astype(jnp.bfloat16)
        zf = zb.astype(jnp.float32)
        sumsq = jnp.sum(zf * zf, axis=-1, keepdims=True)
        raw = lax.dot_general(zb, zcb, dimension_numbers=(((1,), (1,)), ((), ())),
                              preferred_element_type=jnp.float32)
        return raw * lax.rsqrt(sumsq + _EPS)

    lp = ref_logits(Z_boxes, Zc_person)
    ref_probs_p = jax.nn.softmax(lp, axis=-1)
    ref_idx_p = np.asarray(jnp.argmax(lp, axis=-1))
    lc = ref_logits(Z_boxes, Zc_car)
    ref_idx_c = np.asarray(jnp.argmax(lc, axis=-1))

    # Single-classifier path (probs + idx) — matches PyTorch classify() semantics.
    probs, idx = fewshot_classify(Z_boxes, classifiers["person"])
    idx_only = fewshot_classify_idx(Z_boxes, classifiers["person"])
    jax.block_until_ready((probs, idx, idx_only))

    assert probs.shape == (N, C_person) and idx.shape == (N,)
    assert np.allclose(np.asarray(probs), np.asarray(ref_probs_p), atol=2e-3), "probs mismatch"
    assert np.array_equal(np.asarray(idx), ref_idx_p), "argmax mismatch"
    assert np.array_equal(np.asarray(idx_only), ref_idx_p), "idx-only mismatch"

    # Full forward-style glue: one batched kernel launch across mixed classifiers + label scatter.
    out = fewshot_forward(Z_boxes, labels, classifiers)
    assert out[2] is None and out[5] is None
    expected = {
        0: txt_person[int(ref_idx_p[0])], 1: txt_car[int(ref_idx_c[1])],
        3: txt_person[int(ref_idx_p[3])], 4: txt_car[int(ref_idx_c[4])],
        6: txt_person[int(ref_idx_p[6])], 7: txt_person[int(ref_idx_p[7])],
    }
    for i, e in expected.items():
        assert out[i] == e, f"forward scatter mismatch at row {i}: {out[i]} != {e}"

    print("KERNEL_OK")
</pallas_src>

<mosaic_0001>
module attributes {stable_mosaic.version = 11 : i64} {
  func.func @_probs_idx_kernel(%arg0: memref<16x512xbf16, #tpu.memory_space<vmem>>, %arg1: memref<512x128xbf16, #tpu.memory_space<vmem>>, %arg2: memref<16x128xf32, #tpu.memory_space<vmem>>, %arg3: memref<16x128xi32, #tpu.memory_space<vmem>>) attributes {dimension_semantics = [], scalar_prefetch = 0 : i64, scratch_operands = 0 : i64, tpu.core_type = #tpu.core_type<tc>} {
    %c0 = arith.constant 0 : index
    %c0_0 = arith.constant 0 : index
    %0 = vector.load %arg0[%c0, %c0_0] : memref<16x512xbf16, #tpu.memory_space<vmem>>, vector<16x512xbf16>
    %c0_1 = arith.constant 0 : index
    %c0_2 = arith.constant 0 : index
    %1 = vector.load %arg1[%c0_1, %c0_2] : memref<512x128xbf16, #tpu.memory_space<vmem>>, vector<512x128xbf16>
    %2 = arith.extf %0 : vector<16x512xbf16> to vector<16x512xf32>
    %3 = arith.mulf %2, %2 : vector<16x512xf32>
    %cst = arith.constant dense<0.000000e+00> : vector<16xf32>
    %4 = vector.multi_reduction <add>, %3, %cst [1] : vector<16x512xf32> to vector<16xf32>
    %5 = vector.shape_cast %4 : vector<16xf32> to vector<16x1xf32>
    %cst_3 = arith.constant 9.99999996E-13 : f32
    %6 = vector.broadcast %cst_3 : f32 to vector<16x1xf32>
    %7 = arith.addf %5, %6 : vector<16x1xf32>
    %8 = math.rsqrt %7 : vector<16x1xf32>
    %cst_4 = arith.constant dense<0.000000e+00> : vector<16x128xf32>
    %9 = tpu.matmul %0, %1, %cst_4 {dimension_numbers = #tpu.dot_dimension_numbers<[1], [0], [0], [1], [0, 0, 1, 1], [], []>} : vector<16x512xbf16>, vector<512x128xbf16>, vector<16x128xf32> -> vector<16x128xf32>
    %10 = vector.broadcast %8 : vector<16x1xf32> to vector<16x128xf32>
    %11 = arith.mulf %9, %10 : vector<16x128xf32>
    %12 = tpu.iota {dimensions = array<i32: 1>} : vector<16x128xi32>
    %c100_i32 = arith.constant 100 : i32
    %13 = vector.broadcast %c100_i32 : i32 to vector<16x128xi32>
    %14 = arith.cmpi slt, %12, %13 : vector<16x128xi32>
    %cst_5 = arith.constant 0xFF800000 : f32
    %15 = vector.broadcast %cst_5 : f32 to vector<16x128xf32>
    %16 = arith.select %14, %11, %15 : vector<16x128xi1>, vector<16x128xf32>
    %cst_6 = arith.constant dense<0xFF800000> : vector<16xf32>
    %17 = vector.multi_reduction <maximumf>, %16, %cst_6 [1] : vector<16x128xf32> to vector<16xf32>
    %18 = vector.shape_cast %17 : vector<16xf32> to vector<16x1xf32>
    %19 = vector.broadcast %18 : vector<16x1xf32> to vector<16x128xf32>
    %20 = arith.subf %16, %19 : vector<16x128xf32>
    %21 = math.exp %20 : vector<16x128xf32>
    %cst_7 = arith.constant dense<0.000000e+00> : vector<16xf32>
    %22 = vector.multi_reduction <add>, %21, %cst_7 [1] : vector<16x128xf32> to vector<16xf32>
    %23 = vector.shape_cast %22 : vector<16xf32> to vector<16x1xf32>
    %24 = tpu.reciprocal %23 {approx = true} : vector<16x1xf32> -> vector<16x1xf32>
    %25 = vector.broadcast %24 : vector<16x1xf32> to vector<16x128xf32>
    %26 = arith.mulf %21, %25 : vector<16x128xf32>
    %c0_8 = arith.constant 0 : index
    %c0_9 = arith.constant 0 : index
    %27 = vector.load %arg2[%c0_8, %c0_9] : memref<16x128xf32, #tpu.memory_space<vmem>>, vector<16x128xf32>
    tpu.vector_store %arg2[%c0_8, %c0_9], %26 {strides = array<i32>} : memref<16x128xf32, #tpu.memory_space<vmem>>, vector<16x128xf32>,
    %28 = tpu.reduce_index %16 {axis = 1 : i32, kind = #tpu.reduction_kind<arg_max>} : vector<16x128xf32> -> vector<16xi32>
    %29 = vector.shape_cast %28 : vector<16xi32> to vector<16x1xi32>
    %30 = vector.shape_cast %29 : vector<16x1xi32> to vector<16x1xi32>
    %31 = vector.broadcast %30 : vector<16x1xi32> to vector<16x128xi32>
    %c0_10 = arith.constant 0 : index
    %c0_11 = arith.constant 0 : index
    %32 = vector.load %arg3[%c0_10, %c0_11] : memref<16x128xi32, #tpu.memory_space<vmem>>, vector<16x128xi32>
    tpu.vector_store %arg3[%c0_10, %c0_11], %31 {strides = array<i32>} : memref<16x128xi32, #tpu.memory_space<vmem>>, vector<16x128xi32>,
    return
  }
}

</mosaic_0001>

<llo_original>
// kernel: tpu_custom_call.1
$region0: #{tpu_custom_call.1}
  #allocation0 [shape = 'u32[]', space=smem, size = 0x4, offset = 0x4, fixed_abs, tag = 'smem constant byte address 0x4 - core index']
  #allocation1 [shape = 'u32[144,128]{1,0:T(1,128)}', space=vmem, size = 0x12000, scoped, tag = 'internal scratch']
  %s0 = inlined_call_operand.hbm [shape: bf16[16,512], index: 0, kind: input, shape index: {}]
  %s1 = inlined_call_operand.hbm [shape: bf16[512,128], index: 1, kind: input, shape index: {}]
  %s2 = inlined_call_operand.hbm [shape: f32[16,128], index: 2, kind: output, shape index: {0}]
  %s3 = inlined_call_operand.hbm [shape: s32[16,128], index: 3, kind: output, shape index: {1}]
  %4 = xla_tuple %s2, %s3
  %s5 = sld [smem:[#allocation0]]
  $region34: #{tpu_custom_call.1} parent=0
    _
  %s7 = ssub.s32 1, %s5
  %s8 = scalar_select 0, %s7, %s5
  $region1: #{tpu_custom_call.1} parent=0
    #allocation2 [shape = 'u8[16384]{0}', space=vmem, size = 0x4000, scoped, tag = 'input window, operand 0, single buffered']
    #allocation3 [shape = 's32[1]{0}', space=sflag, size = 0x4, scoped, tag = 'scoped memory for tpu_custom_call.1']
    #allocation4 [shape = 's32[1]{0}', space=sflag, size = 0x4, scoped, tag = 'scoped memory for tpu_custom_call.1']
    #allocation5 [shape = 'u8[131072]{0}', space=vmem, size = 0x20000, scoped, tag = 'input window, operand 1, single buffered']
    #allocation6 [shape = 's32[1]{0}', space=sflag, size = 0x4, scoped, tag = 'scoped memory for tpu_custom_call.1']
    #allocation7 [shape = 'u8[8192]{0}', space=vmem, size = 0x2000, scoped, tag = 'output window, operand 0, single buffered']
    #allocation8 [shape = 'u8[8192]{0}', space=vmem, size = 0x2000, scoped, tag = 'output window, operand 1, single buffered']
    #allocation9 [shape = 's32[1]{0}', space=sflag, size = 0x4, scoped, tag = 'scoped memory for tpu_custom_call.1']
    %9 = vsyncpa [#allocation3], 0
    %10 = vsyncpa [#allocation6], 0
    %11 = vsyncpa [#allocation4], 0
    %12 = vsyncpa [#allocation9], 0
    // Predicated region
    $region2: #{tpu_custom_call.1} parent=1 // pred_check
      _
    $region3: #{tpu_custom_call.1} parent=1 // pred_check_branch
      %14 = sbr.rel (0) target = $region5
    $region4: #{tpu_custom_call.1} parent=1 // pred_region
      %s16 = ssub.s32 512, 512
      %17 = vsyncadd [#allocation3], %s16
      %s18 = sshll.u32 [#allocation2], 4
      %s19 = int_to_ptr.vmem [resolvable:$true] %s18
      %24 = dma.hbm_to_vmem [thread:$0]  %s0, 512, %s19, [#allocation3], 256, 256, 16
    $region5: #{tpu_custom_call.1} parent=1 // pred_fallthru
      _
    // Predicated region
    $region6: #{tpu_custom_call.1} parent=1 // pred_check
      _
    $region7: #{tpu_custom_call.1} parent=1 // pred_check_branch
      %26 = sbr.rel (0) target = $region9
    $region8: #{tpu_custom_call.1} parent=1 // pred_region
      %s28 = ssub.s32 4096, 4096
      %29 = vsyncadd [#allocation6], %s28
      %s30 = sshll.u32 [#allocation5], 4
      %s31 = int_to_ptr.vmem [resolvable:$true] %s30
      %36 = dma.hbm_to_vmem [thread:$0]  %s1, 4096, %s31, [#allocation6], 64, 64, 4
    $region9: #{tpu_custom_call.1} parent=1 // pred_fallthru
      _
    // Predicated region
    $region10: #{tpu_custom_call.1} parent=1 // pred_check
      _
    $region11: #{tpu_custom_call.1} parent=1 // pred_check_branch
      %38 = sbr.rel (0) target = $region13
    $region12: #{tpu_custom_call.1} parent=1 // pred_region
      %39 = dma.done [#allocation3], 512
    $region13: #{tpu_custom_call.1} parent=1 // pred_fallthru
      _
    // Predicated region
    $region14: #{tpu_custom_call.1} parent=1 // pred_check
      _
    $region15: #{tpu_custom_call.1} parent=1 // pred_check_branch
      %41 = sbr.rel (0) target = $region17
    $region16: #{tpu_custom_call.1} parent=1 // pred_region
      %42 = dma.done [#allocation6], 4096
    $region17: #{tpu_custom_call.1} parent=1 // pred_fallthru
      _
    %v44 = vld [vmem:[#allocation2] sm:$0xff]
    %v45 = vld [vmem:[#allocation2 + $0x8] sm:$0xff]
    %v46 = vld [vmem:[#allocation2 + $0x10] sm:$0xff]
    %v47 = vld [vmem:[#allocation2 + $0x18] sm:$0xff]
    %v48 = vld [vmem:[#allocation5] sm:$0xf]
    %v49 = vld [vmem:[#allocation5 + $0x4] sm:$0xf]
    %v50 = vld [vmem:[#allocation5 + $0x8] sm:$0xf]
    %v51 = vld [vmem:[#allocation5 + $0xc] sm:$0xf]
    %v52 = vld [vmem:[#allocation5 + $0x10] sm:$0xf]
    %v53 = vld [vmem:[#allocation5 + $0x14] sm:$0xf]
    %v54 = vld [vmem:[#allocation5 + $0x18] sm:$0xf]
    %v55 = vld [vmem:[#allocation5 + $0x1c] sm:$0xf]
    %v56 = vld [vmem:[#allocation5 + $0x20] sm:$0xf]
    %v57 = vld [vmem:[#allocation5 + $0x24] sm:$0xf]
    %v58 = vld [vmem:[#allocation5 + $0x28] sm:$0xf]
    %v59 = vld [vmem:[#allocation5 + $0x2c] sm:$0xf]
    %v60 = vld [vmem:[#allocation5 + $0x30] sm:$0xf]
    %v61 = vld [vmem:[#allocation5 + $0x34] sm:$0xf]
    %v62 = vld [vmem:[#allocation5 + $0x38] sm:$0xf]
    %v63 = vld [vmem:[#allocation5 + $0x3c] sm:$0xf]
    %v64 = vld [vmem:[#allocation5 + $0x40] sm:$0xf]
    %v65 = vld [vmem:[#allocation5 + $0x44] sm:$0xf]
    %v66 = vld [vmem:[#allocation5 + $0x48] sm:$0xf]
    %v67 = vld [vmem:[#allocation5 + $0x4c] sm:$0xf]
    %v68 = vld [vmem:[#allocation5 + $0x50] sm:$0xf]
    %v69 = vld [vmem:[#allocation5 + $0x54] sm:$0xf]
    %v70 = vld [vmem:[#allocation5 + $0x58] sm:$0xf]
    %v71 = vld [vmem:[#allocation5 + $0x5c] sm:$0xf]
    %v72 = vld [vmem:[#allocation5 + $0x60] sm:$0xf]
    %v73 = vld [vmem:[#allocation5 + $0x64] sm:$0xf]
    %v74 = vld [vmem:[#allocation5 + $0x68] sm:$0xf]
    %v75 = vld [vmem:[#allocation5 + $0x6c] sm:$0xf]
    %v76 = vld [vmem:[#allocation5 + $0x70] sm:$0xf]
    %v77 = vld [vmem:[#allocation5 + $0x74] sm:$0xf]
    %v78 = vld [vmem:[#allocation5 + $0x78] sm:$0xf]
    %v79 = vld [vmem:[#allocation5 + $0x7c] sm:$0xf]
    %v80 = vld [vmem:[#allocation5 + $0x80] sm:$0xf]
    %v81 = vld [vmem:[#allocation5 + $0x84] sm:$0xf]
    %v82 = vld [vmem:[#allocation5 + $0x88] sm:$0xf]
    %v83 = vld [vmem:[#allocation5 + $0x8c] sm:$0xf]
    %v84 = vld [vmem:[#allocation5 + $0x90] sm:$0xf]
    %v85 = vld [vmem:[#allocation5 + $0x94] sm:$0xf]
    %v86 = vld [vmem:[#allocation5 + $0x98] sm:$0xf]
    %v87 = vld [vmem:[#allocation5 + $0x9c] sm:$0xf]
    %v88 = vld [vmem:[#allocation5 + $0xa0] sm:$0xf]
    %v89 = vld [vmem:[#allocation5 + $0xa4] sm:$0xf]
    %v90 = vld [vmem:[#allocation5 + $0xa8] sm:$0xf]
    %v91 = vld [vmem:[#allocation5 + $0xac] sm:$0xf]
    %v92 = vld [vmem:[#allocation5 + $0xb0] sm:$0xf]
    %v93 = vld [vmem:[#allocation5 + $0xb4] sm:$0xf]
    %v94 = vld [vmem:[#allocation5 + $0xb8] sm:$0xf]
    %v95 = vld [vmem:[#allocation5 + $0xbc] sm:$0xf]
    %v96 = vld [vmem:[#allocation5 + $0xc0] sm:$0xf]
    %v97 = vld [vmem:[#allocation5 + $0xc4] sm:$0xf]
    %v98 = vld [vmem:[#allocation5 + $0xc8] sm:$0xf]
    %v99 = vld [vmem:[#allocation5 + $0xcc] sm:$0xf]
    %v100 = vld [vmem:[#allocation5 + $0xd0] sm:$0xf]
    %v101 = vld [vmem:[#allocation5 + $0xd4] sm:$0xf]
    %v102 = vld [vmem:[#allocation5 + $0xd8] sm:$0xf]
    %v103 = vld [vmem:[#allocation5 + $0xdc] sm:$0xf]
    %v104 = vld [vmem:[#allocation5 + $0xe0] sm:$0xf]
    %v105 = vld [vmem:[#allocation5 + $0xe4] sm:$0xf]
    %v106 = vld [vmem:[#allocation5 + $0xe8] sm:$0xf]
    %v107 = vld [vmem:[#allocation5 + $0xec] sm:$0xf]
    %v108 = vld [vmem:[#allocation5 + $0xf0] sm:$0xf]
    %v109 = vld [vmem:[#allocation5 + $0xf4] sm:$0xf]
    %v110 = vld [vmem:[#allocation5 + $0xf8] sm:$0xf]
    %v111 = vld [vmem:[#allocation5 + $0xfc] sm:$0xf]
    %v112 = vunpack.c.l.bf16 %v44
    %v113 = vunpack.c.h.bf16 %v44
    %v114 = vunpack.c.l.bf16 %v45
    %v115 = vunpack.c.h.bf16 %v45
    %v116 = vunpack.c.l.bf16 %v46
    %v117 = vunpack.c.h.bf16 %v46
    %v118 = vunpack.c.l.bf16 %v47
    %v119 = vunpack.c.h.bf16 %v47
    %v120 = vmul.f32 %v112, %v112
    %v121 = vmul.f32 %v113, %v113
    %v122 = vmul.f32 %v114, %v114
    %v123 = vmul.f32 %v115, %v115
    %v124 = vmul.f32 %v116, %v116
    %v125 = vmul.f32 %v117, %v117
    %v126 = vmul.f32 %v118, %v118
    %v127 = vmul.f32 %v119, %v119
    %v128 = vadd.f32 %v120, %v121
    %v129 = vadd.f32 %v128, %v122
    %v130 = vadd.f32 %v129, %v123
    %131 = vadd.xlane.f32.xlu0 %v130
    %v132 = vpop.xlane.xlu0 %131
    %v133 = vadd.f32 %v124, %v125
    %v134 = vadd.f32 %v133, %v126
    %v135 = vadd.f32 %v134, %v127
    %136 = vadd.xlane.f32.xlu0 %v135
    %v137 = vpop.xlane.xlu0 %136
    %v138 = vadd.f32 %v132, 1e-12
    %v139 = vadd.f32 %v137, 1e-12
    %v140 = vrsqrt.pop %v138
    %v141 = vrsqrt.pop %v139
    %v146 = vunpack.c.l.b16 %v44
    %v147 = vunpack.c.h.b16 %v44
    %v148 = vunpack.c.l.b16 %v45
    %v149 = vunpack.c.h.b16 %v45
    %v150 = vunpack.c.l.b16 %v46
    %v151 = vunpack.c.h.b16 %v46
    %v152 = vunpack.c.l.b16 %v47
    %v153 = vunpack.c.h.b16 %v47
    %v154 = vpack.c.b16 %v150, %v146
    %v155 = vpack.c.b16 %v151, %v147
    %v156 = vpack.c.b16 %v152, %v148
    %v157 = vpack.c.b16 %v153, %v149
    %v226 = vunpack.c.l.b16 %v48
    %v227 = vunpack.c.l.b16 %v49
    %v228 = vunpack.c.l.b16 %v50
    %v229 = vunpack.c.l.b16 %v51
    %v230 = vunpack.c.l.b16 %v52
    %v231 = vunpack.c.l.b16 %v53
    %v232 = vunpack.c.l.b16 %v54
    %v233 = vunpack.c.l.b16 %v55
    %v234 = vunpack.c.l.b16 %v56
    %v235 = vunpack.c.l.b16 %v57
    %v236 = vunpack.c.l.b16 %v58
    %v237 = vunpack.c.l.b16 %v59
    %v238 = vunpack.c.l.b16 %v60
    %v239 = vunpack.c.l.b16 %v61
    %v240 = vunpack.c.l.b16 %v62
    %v241 = vunpack.c.l.b16 %v63
    %v242 = vunpack.c.l.b16 %v64
    %v243 = vunpack.c.l.b16 %v65
    %v244 = vunpack.c.l.b16 %v66
    %v245 = vunpack.c.l.b16 %v67
    %v246 = vunpack.c.l.b16 %v68
    %v247 = vunpack.c.l.b16 %v69
    %v248 = vunpack.c.l.b16 %v70
    %v249 = vunpack.c.l.b16 %v71
    %v250 = vunpack.c.l.b16 %v72
    %v251 = vunpack.c.l.b16 %v73
    %v252 = vunpack.c.l.b16 %v74
    %v253 = vunpack.c.l.b16 %v75
    %v254 = vunpack.c.l.b16 %v76
    %v255 = vunpack.c.l.b16 %v77
    %v256 = vunpack.c.l.b16 %v78
    %v257 = vunpack.c.l.b16 %v79
    %v258 = vunpack.c.l.b16 %v80
    %v259 = vunpack.c.l.b16 %v81
    %v260 = vunpack.c.l.b16 %v82
    %v261 = vunpack.c.l.b16 %v83
    %v262 = vunpack.c.l.b16 %v84
    %v263 = vunpack.c.l.b16 %v85
    %v264 = vunpack.c.l.b16 %v86
    %v265 = vunpack.c.l.b16 %v87
    %v266 = vunpack.c.l.b16 %v88
    %v267 = vunpack.c.l.b16 %v89
    %v268 = vunpack.c.l.b16 %v90
    %v269 = vunpack.c.l.b16 %v91
    %v270 = vunpack.c.l.b16 %v92
    %v271 = vunpack.c.l.b16 %v93
    %v272 = vunpack.c.l.b16 %v94
    %v273 = vunpack.c.l.b16 %v95
    %v274 = vunpack.c.l.b16 %v96
    %v275 = vunpack.c.l.b16 %v97
    %v276 = vunpack.c.l.b16 %v98
    %v277 = vunpack.c.l.b16 %v99
    %v278 = vunpack.c.l.b16 %v100
    %v279 = vunpack.c.l.b16 %v101
    %v280 = vunpack.c.l.b16 %v102
    %v281 = vunpack.c.l.b16 %v103
    %v282 = vunpack.c.l.b16 %v104
    %v283 = vunpack.c.l.b16 %v105
    %v284 = vunpack.c.l.b16 %v106
    %v285 = vunpack.c.l.b16 %v107
    %v286 = vunpack.c.l.b16 %v108
    %v287 = vunpack.c.l.b16 %v109
    %v288 = vunpack.c.l.b16 %v110
    %v289 = vunpack.c.l.b16 %v111
    %v290 = vpack.c.b16 %v227, %v226
    %v291 = vpack.c.b16 %v229, %v228
    %v292 = vpack.c.b16 %v231, %v230
    %v293 = vpack.c.b16 %v233, %v232
    %v294 = vpack.c.b16 %v235, %v234
    %v295 = vpack.c.b16 %v237, %v236
    %v296 = vpack.c.b16 %v239, %v238
    %v297 = vpack.c.b16 %v241, %v240
    %v298 = vpack.c.b16 %v243, %v242
    %v299 = vpack.c.b16 %v245, %v244
    %v300 = vpack.c.b16 %v247, %v246
    %v301 = vpack.c.b16 %v249, %v248
    %v302 = vpack.c.b16 %v251, %v250
    %v303 = vpack.c.b16 %v253, %v252
    %v304 = vpack.c.b16 %v255, %v254
    %v305 = vpack.c.b16 %v257, %v256
    %v306 = vpack.c.b16 %v259, %v258
    %v307 = vpack.c.b16 %v261, %v260
    %v308 = vpack.c.b16 %v263, %v262
    %v309 = vpack.c.b16 %v265, %v264
    %v310 = vpack.c.b16 %v267, %v266
    %v311 = vpack.c.b16 %v269, %v268
    %v312 = vpack.c.b16 %v271, %v270
    %v313 = vpack.c.b16 %v273, %v272
    %v314 = vpack.c.b16 %v275, %v274
    %v315 = vpack.c.b16 %v277, %v276
    %v316 = vpack.c.b16 %v279, %v278
    %v317 = vpack.c.b16 %v281, %v280
    %v318 = vpack.c.b16 %v283, %v282
    %v319 = vpack.c.b16 %v285, %v284
    %v320 = vpack.c.b16 %v287, %v286
    %v321 = vpack.c.b16 %v289, %v288
    %354 = vmatprep.subr.bf16.mxu0 0
    %355 = vmatpush1.bf16.msra.mxu0 %v290
    %356 = vmatprep.subr.bf16.mxu0 0
    %357 = vmatpush1.bf16.msra.mxu0 %v291
    %358 = vmatprep.subr.bf16.mxu0 0
    %359 = vmatpush1.bf16.msra.mxu0 %v292
    %360 = vmatprep.subr.bf16.mxu0 0
    %361 = vmatpush1.bf16.msra.mxu0 %v293
    %362 = vmatprep.subr.bf16.mxu0 0
    %363 = vmatpush1.bf16.msra.mxu0 %v294
    %364 = vmatprep.subr.bf16.mxu0 0
    %365 = vmatpush1.bf16.msra.mxu0 %v295
    %366 = vmatprep.subr.bf16.mxu0 0
    %367 = vmatpush1.bf16.msra.mxu0 %v296
    %368 = vmatprep.subr.bf16.mxu0 0
    %369 = vmatpush1.bf16.msra.mxu0 %v297
    %370 = vmatprep.subr.bf16.mxu0 0
    %371 = vmatpush1.bf16.msra.mxu0 %v298
    %372 = vmatprep.subr.bf16.mxu0 0
    %373 = vmatpush1.bf16.msra.mxu0 %v299
    %374 = vmatprep.subr.bf16.mxu0 0
    %375 = vmatpush1.bf16.msra.mxu0 %v300
    %376 = vmatprep.subr.bf16.mxu0 0
    %377 = vmatpush1.bf16.msra.mxu0 %v301
    %378 = vmatprep.subr.bf16.mxu0 0
    %379 = vmatpush1.bf16.msra.mxu0 %v302
    %380 = vmatprep.subr.bf16.mxu0 0
    %381 = vmatpush1.bf16.msra.mxu0 %v303
    %382 = vmatprep.subr.bf16.mxu0 0
    %383 = vmatpush1.bf16.msra.mxu0 %v304
    %384 = vmatprep.subr.bf16.mxu0 0
    %385 = vmatpush1.bf16.msra.mxu0 %v305
    %386 = vmatprep.mubr.bf16.mxu0 %v155
    %387 = vmatmul.mubr.bf16.gmra.mrb[0].mxu0 %v154
    %v388 = vpop.f32.mrb[0].mxu0
    %v389 = vadd.f32 0.0, %v388
    %v390 = vpop.f32.mrb[0].mxu0
    %v391 = vpop.f32.mrb[0].mxu0
    %v392 = vadd.f32 0.0, %v391
    %v393 = vpop.f32.mrb[0].mxu0
    %394 = vdwg.mxu0
    %395 = vmatprep.subr.bf16.mxu0 0
    %396 = vmatpush1.bf16.msra.mxu0 %v306
    %397 = vmatprep.subr.bf16.mxu0 0
    %398 = vmatpush1.bf16.msra.mxu0 %v307
    %399 = vmatprep.subr.bf16.mxu0 0
    %400 = vmatpush1.bf16.msra.mxu0 %v308
    %401 = vmatprep.subr.bf16.mxu0 0
    %402 = vmatpush1.bf16.msra.mxu0 %v309
    %403 = vmatprep.subr.bf16.mxu0 0
    %404 = vmatpush1.bf16.msra.mxu0 %v310
    %405 = vmatprep.subr.bf16.mxu0 0
    %406 = vmatpush1.bf16.msra.mxu0 %v311
    %407 = vmatprep.subr.bf16.mxu0 0
    %408 = vmatpush1.bf16.msra.mxu0 %v312
    %409 = vmatprep.subr.bf16.mxu0 0
    %410 = vmatpush1.bf16.msra.mxu0 %v313
    %411 = vmatprep.subr.bf16.mxu0 0
    %412 = vmatpush1.bf16.msra.mxu0 %v314
    %413 = vmatprep.subr.bf16.mxu0 0
    %414 = vmatpush1.bf16.msra.mxu0 %v315
    %415 = vmatprep.subr.bf16.mxu0 0
    %416 = vmatpush1.bf16.msra.mxu0 %v316
    %417 = vmatprep.subr.bf16.mxu0 0
    %418 = vmatpush1.bf16.msra.mxu0 %v317
    %419 = vmatprep.subr.bf16.mxu0 0
    %420 = vmatpush1.bf16.msra.mxu0 %v318
    %421 = vmatprep.subr.bf16.mxu0 0
    %422 = vmatpush1.bf16.msra.mxu0 %v319
    %423 = vmatprep.subr.bf16.mxu0 0
    %424 = vmatpush1.bf16.msra.mxu0 %v320
    %425 = vmatprep.subr.bf16.mxu0 0
    %426 = vmatpush1.bf16.msra.mxu0 %v321
    %427 = vmatprep.mubr.bf16.mxu0 %v157
    %428 = vmatmul.mubr.bf16.gmra.mrb[0].mxu0 %v156
    %v429 = vpop.f32.mrb[0].mxu0
    %v430 = vadd.f32 %v389, %v429
    %v431 = vpop.f32.mrb[0].mxu0
    %v432 = vpop.f32.mrb[0].mxu0
    %v433 = vadd.f32 %v392, %v432
    %v434 = vpop.f32.mrb[0].mxu0
    %435 = vdwg.mxu0
    %v436 = vmul.f32 %v430, %v140
    %v437 = vmul.f32 %v433, %v141
    %v438 = vlaneseq
    %v439 = vand.u32 %v438, 127
    %vm440 = vcmp.lt.s32.totalorder %v439, 100
    %v441 = vsel %vm440, %v436, -inf
    %v442 = vsel %vm440, %v437, -inf
    %443 = vmax.xlane.f32.xlu0 %v441
    %v444 = vpop.xlane.xlu0 %443
    %445 = vmax.xlane.f32.xlu0 %v442
    %v446 = vpop.xlane.xlu0 %445
    %v447 = vsub.f32 %v441, %v444
    %v448 = vsub.f32 %v442, %v446
    %v449 = vmul.f32 %v447, 1.442695
    %v450 = vpow.pop %v449
    %v451 = vmul.f32 %v448, 1.442695
    %v452 = vpow.pop %v451
    %453 = vadd.xlane.f32.xlu0 %v450
    %v454 = vpop.xlane.xlu0 %453
    %455 = vadd.xlane.f32.xlu0 %v452
    %v456 = vpop.xlane.xlu0 %455
    %v457 = vrcp.pop %v454
    %v458 = vrcp.pop %v456
    %v459 = vmul.f32 %v450, %v457
    %v460 = vmul.f32 %v452, %v458
    %461 = vst [vmem:[#allocation7] sm:$0xff] %v459
    %462 = vst [vmem:[#allocation7 + $0x8] sm:$0xff] %v460
    %463 = vmax.index.xlane.f32.xlu0 %v441
    %v464 = vpop.xlane.xlu0 %463
    %465 = vmax.index.xlane.f32.xlu0 %v442
    %v466 = vpop.xlane.xlu0 %465
    %467 = vst [vmem:[#allocation8] sm:$0xff] %v464
    %468 = vst [vmem:[#allocation8 + $0x8] sm:$0xff] %v466
    // Predicated region
    $region18: #{tpu_custom_call.1} parent=1 // pred_check
      _
    $region19: #{tpu_custom_call.1} parent=1 // pred_check_branch
      %470 = sbr.rel (0) target = $region21
    $region20: #{tpu_custom_call.1} parent=1 // pred_region
      %s472 = ssub.s32 256, 256
      %473 = vsyncadd [#allocation4], %s472
      %s474 = sshll.u32 [#allocation7], 4
      %s475 = int_to_ptr.vmem [resolvable:$true] %s474
      %480 = dma.vmem_to_hbm [thread:$0]  %s475, 256, %s2, [#allocation4], 128, 128, 8
    $region21: #{tpu_custom_call.1} parent=1 // pred_fallthru
      _
    // Predicated region
    $region22: #{tpu_custom_call.1} parent=1 // pred_check
      _
    $region23: #{tpu_custom_call.1} parent=1 // pred_check_branch
      %482 = sbr.rel (0) target = $region25
    $region24: #{tpu_custom_call.1} parent=1 // pred_region
      %s484 = ssub.s32 256, 256
      %485 = vsyncadd [#allocation9], %s484
      %s486 = sshll.u32 [#allocation8], 4
      %s487 = int_to_ptr.vmem [resolvable:$true] %s486
      %492 = dma.vmem_to_hbm [thread:$0]  %s487, 256, %s3, [#allocation9], 128, 128, 8
    $region25: #{tpu_custom_call.1} parent=1 // pred_fallthru
      _
    // Predicated region
    $region26: #{tpu_custom_call.1} parent=1 // pred_check
      _
    $region27: #{tpu_custom_call.1} parent=1 // pred_check_branch
      %494 = sbr.rel (0) target = $region29
    $region28: #{tpu_custom_call.1} parent=1 // pred_region
      %495 = dma.done [#allocation4], 256
    $region29: #{tpu_custom_call.1} parent=1 // pred_fallthru
      _
    // Predicated region
    $region30: #{tpu_custom_call.1} parent=1 // pred_check
      _
    $region31: #{tpu_custom_call.1} parent=1 // pred_check_branch
      %497 = sbr.rel (0) target = $region33
    $region32: #{tpu_custom_call.1} parent=1 // pred_region
      %498 = dma.done [#allocation9], 256
    $region33: #{tpu_custom_call.1} parent=1 // pred_fallthru
      _
    %499 = vsyncpa [#allocation3], 1
    %500 = vsyncpa [#allocation6], 1
    %501 = vsyncpa [#allocation4], 1
    %502 = vsyncpa [#allocation9], 1

</llo_original>
